<compile_context>
chip_gen: v6e
topology: v6e:2x2x1
jax: 0.10.0
libtpu: 0.0.40
codegen_flags: <defaults>
</compile_context>

<pallas_src>
import jax
import jax.numpy as jnp
from jax.experimental import pallas as pl
from jax.experimental.pallas import tpu as pltpu


def _round_up(x, m):
    return ((x + m - 1) // m) * m


def _round_down(x, m):
    return (x // m) * m


def _vmem_capacity_bytes():
    try:
        cap = int(pltpu.get_tpu_info().vmem_capacity_bytes)
        if cap > 0:
            return cap
    except Exception:
        pass
    return 64 * 1024 * 1024  # conservative fallback (v7x-sized)


def _default_num_splits():
    # 2 TensorCores per chip on v7x -> shard the leading "parallel" grid axis across them.
    try:
        kind = jax.devices()[0].device_kind.lower()
        if "v7" in kind:
            return 2
    except Exception:
        pass
    return 1


def _make_kernel(tiles_per_split, tb, true_b):
    def kernel(p_ref, yp_ref, yt_ref, out_ref, acc_ref):
        s = pl.program_id(0)  # split axis ("parallel")
        i = pl.program_id(1)  # reduction axis over batch tiles ("arbitrary")

        @pl.when(i == 0)
        def _init():
            acc_ref[...] = jnp.zeros_like(acc_ref)

        p = p_ref[...].astype(jnp.float32)   # (N, TB) halting probabilities
        x = yp_ref[...].astype(jnp.float32)  # (N, TB) predicted logits
        y = yt_ref[...].astype(jnp.float32)  # (1, TB) targets (broadcast over steps)

        # Numerically stable BCE-with-logits (reduction="none"):
        #   l = max(x, 0) - x*y + log1p(exp(-|x|))
        bce = jnp.maximum(x, 0.0) - x * y + jnp.log1p(jnp.exp(-jnp.abs(x)))

        # Sublane (step-axis) reduce -> (1, TB); goes to the XLU which has free slots.
        row = jnp.sum(p * bce, axis=0, keepdims=True)

        # Mask the ragged tail (and any fully-out-of-range duplicate tile) against the true
        # batch size; out-of-bounds DMA contents are undefined, so mask AFTER the reduce.
        start = (s * tiles_per_split + i) * tb
        lane = jax.lax.broadcasted_iota(jnp.int32, (1, tb), 1)
        valid = (start + lane) < true_b
        acc_ref[...] += jnp.where(valid, row, 0.0)

        @pl.when(i == pl.num_programs(1) - 1)
        def _finalize():
            # One cross-lane reduce per split; lane-dense (1, 128) store (unmasked vst).
            total = jnp.sum(acc_ref[...])
            out_ref[...] = jnp.full((1, 128), total, dtype=jnp.float32)

    return kernel


def reconstruction_loss(p, y_pred, y_true, *, tile_b=None, num_splits=None, max_tile_b=32768):
    """p, y_pred: (max_steps, batch); y_true: (batch,). Returns f32 scalar loss."""
    n, b = p.shape
    true_b = int(b)

    # Tiny-batch path only: pad lanes up to 128 (arrays are tiny, copy negligible).
    if b < 128:
        pad = 128 - b
        p = jnp.pad(p, ((0, 0), (0, pad)))
        y_pred = jnp.pad(y_pred, ((0, 0), (0, pad)))
        y_true = jnp.pad(y_true, ((0, pad),))
        b = 128

    ip = p.dtype.itemsize
    ix = y_pred.dtype.itemsize
    iy = y_true.dtype.itemsize

    # --- VMEM-budget-aware lane tile -------------------------------------------------------
    vmem_cap = _vmem_capacity_bytes()
    budget = int(vmem_cap * 0.45)  # headroom for compiler scratch / other buffers
    per_lane_bytes = 2 * (n * ip + n * ix + iy) + 4  # double-buffered inputs + f32 accumulator
    tb_budget = max(128, _round_down(budget // per_lane_bytes, 128))

    if tile_b is None:
        tb = min(tb_budget, int(max_tile_b))
    else:
        tb = _round_up(int(tile_b), 128)
    # Never larger than the array's lane extent (ragged LAST tile is fine; oversized block is not).
    tb = max(128, min(tb, _round_down(b, 128)))

    total_tiles = pl.cdiv(b, tb)

    if num_splits is None:
        num_splits = _default_num_splits()
    num_splits = max(1, min(int(num_splits), total_tiles))
    tiles_per_split = pl.cdiv(total_tiles, num_splits)

    yt2d = y_true.reshape(1, b)

    # Clamp the block index so every DMA window starts inside the array even when
    # num_splits * tiles_per_split > total_tiles (duplicate tiles are masked to zero in-kernel).
    last_block = total_tiles - 1

    def batch_block(s, i):
        return jnp.minimum(s * tiles_per_split + i, last_block)

    grid_spec = pltpu.PrefetchScalarGridSpec(
        num_scalar_prefetch=0,
        grid=(num_splits, tiles_per_split),
        in_specs=[
            pl.BlockSpec((n, tb), lambda s, i: (0, batch_block(s, i))),
            pl.BlockSpec((n, tb), lambda s, i: (0, batch_block(s, i))),
            pl.BlockSpec((1, tb), lambda s, i: (0, batch_block(s, i))),
        ],
        # One lane-dense (1, 128) partial-sum slab per split, resident across the reduction axis.
        out_specs=pl.BlockSpec((1, 128), lambda s, i: (0, s)),
        scratch_shapes=[pltpu.VMEM((1, tb), jnp.float32)],
    )

    # vmem_limit from the actual tile footprint (double-buffered inputs + scratch + slack).
    tile_bytes = 2 * (n * tb * ip + n * tb * ix + tb * iy)
    vmem_needed = tile_bytes + tb * 4 + 128 * 4 * 2 + (2 << 20)
    vmem_limit = int(min(vmem_cap, max(vmem_needed, 32 * 1024 * 1024)))

    cost = pl.CostEstimate(
        flops=10 * n * b,
        transcendentals=2 * n * b,
        bytes_accessed=(p.size * ip + y_pred.size * ix + yt2d.size * iy
                        + num_splits * 128 * 4),
    )

    kernel = _make_kernel(tiles_per_split, tb, true_b)

    partials = pl.pallas_call(
        kernel,
        out_shape=jax.ShapeDtypeStruct((1, 128 * num_splits), jnp.float32),
        grid_spec=grid_spec,
        compiler_params=pltpu.CompilerParams(
            dimension_semantics=("parallel", "arbitrary"),
            vmem_limit_bytes=vmem_limit,
        ),
        cost_estimate=cost,
    )(p, y_pred, yt2d)

    # Each split's partial sum is broadcast across its 128 lanes; pick lane 0 per split.
    per_split = partials.reshape(num_splits, 128)[:, 0]
    # sum_n mean_b == total_sum / B (ORIGINAL batch size).
    return jnp.sum(per_split) * (1.0 / float(true_b))


def reconstruction_loss_ref(p, y_pred, y_true):
    """Pure-JAX reference mirroring the PyTorch forward loop."""
    x = y_pred.astype(jnp.float32)
    y = y_true.astype(jnp.float32)[None, :]
    bce = jnp.maximum(x, 0.0) - x * y + jnp.log1p(jnp.exp(-jnp.abs(x)))
    per_step = jnp.mean(p.astype(jnp.float32) * bce, axis=1)  # mean over batch
    return jnp.sum(per_step)                                   # sum over steps


if __name__ == "__main__":
    key = jax.random.PRNGKey(0)
    k1, k2, k3, k4, k5, k6, k7, k8, k9 = jax.random.split(key, 9)

    # --- test 1: multi-tile grid, 2-way split (accumulator + per-split partials exercised)
    max_steps, batch = 8, 512
    p = jax.nn.softmax(jax.random.normal(k1, (max_steps, batch), jnp.float32), axis=0)
    y_pred = jax.random.normal(k2, (max_steps, batch), jnp.float32)
    y_true = jax.random.bernoulli(k3, 0.5, (batch,)).astype(jnp.float32)

    loss = reconstruction_loss(p, y_pred, y_true, tile_b=128, num_splits=2)
    loss = jax.block_until_ready(loss)
    ref = reconstruction_loss_ref(p, y_pred, y_true)
    assert jnp.allclose(loss, ref, rtol=1e-5, atol=1e-5), (loss, ref)

    # --- test 2: unaligned batch (ragged last tile masked in-kernel, no padding of big arrays)
    max_steps2, batch2 = 8, 300
    p2 = jax.nn.softmax(jax.random.normal(k4, (max_steps2, batch2), jnp.float32), axis=0)
    y_pred2 = jax.random.normal(k5, (max_steps2, batch2), jnp.float32)
    y_true2 = jax.random.bernoulli(k6, 0.5, (batch2,)).astype(jnp.float32)

    loss2a = jax.block_until_ready(reconstruction_loss(p2, y_pred2, y_true2))            # auto tb/splits
    loss2b = jax.block_until_ready(reconstruction_loss(p2, y_pred2, y_true2,
                                                       tile_b=128, num_splits=2))        # split + ragged
    ref2 = reconstruction_loss_ref(p2, y_pred2, y_true2)
    assert jnp.allclose(loss2a, ref2, rtol=1e-5, atol=1e-5), (loss2a, ref2)
    assert jnp.allclose(loss2b, ref2, rtol=1e-5, atol=1e-5), (loss2b, ref2)

    # --- test 3: tiny batch (<128 lanes) and bf16 inputs (kernel upcasts, accumulates in f32)
    max_steps3, batch3 = 4, 64
    p3 = jax.nn.softmax(jax.random.normal(k7, (max_steps3, batch3), jnp.float32), axis=0)
    y_pred3 = jax.random.normal(k8, (max_steps3, batch3), jnp.float32)
    y_true3 = jax.random.bernoulli(k9, 0.5, (batch3,)).astype(jnp.float32)

    loss3 = jax.block_until_ready(reconstruction_loss(p3, y_pred3, y_true3))
    ref3 = reconstruction_loss_ref(p3, y_pred3, y_true3)
    assert jnp.allclose(loss3, ref3, rtol=1e-5, atol=1e-5), (loss3, ref3)

    p_bf, yp_bf = p.astype(jnp.bfloat16), y_pred.astype(jnp.bfloat16)
    loss_bf = jax.block_until_ready(reconstruction_loss(p_bf, yp_bf, y_true))
    ref_bf = reconstruction_loss_ref(p_bf, yp_bf, y_true)
    assert jnp.allclose(loss_bf, ref_bf, rtol=1e-4, atol=1e-4), (loss_bf, ref_bf)

    print("KERNEL_OK")
</pallas_src>

<mosaic_0001>
module attributes {stable_mosaic.version = 11 : i64} {
  func.func @kernel(%arg0: i32, %arg1: i32, %arg2: memref<8x128xf32, #tpu.memory_space<vmem>>, %arg3: memref<8x128xf32, #tpu.memory_space<vmem>>, %arg4: memref<1x128xf32, #tpu.memory_space<vmem>>, %arg5: memref<1x128xf32, #tpu.memory_space<vmem>>, %arg6: memref<1x128xf32, #tpu.memory_space<vmem>>) attributes {dimension_semantics = [#tpu.dimension_semantics<parallel>, #tpu.dimension_semantics<arbitrary>], iteration_bounds = array<i64: 2, 2>, scalar_prefetch = 0 : i64, scratch_operands = 1 : i64, tpu.core_type = #tpu.core_type<tc>, window_params = [{transform_indices = @transform_0, window_bounds = array<i64: 8, 128>}, {transform_indices = @transform_1, window_bounds = array<i64: 8, 128>}, {transform_indices = @transform_2, window_bounds = array<i64: 1, 128>}, {transform_indices = @transform_3, window_bounds = array<i64: 1, 128>}]} {
    %c0_i32 = arith.constant 0 : i32
    %0 = arith.cmpi eq, %arg1, %c0_i32 : i32
    %1 = arith.extui %0 : i1 to i32
    %c0_i32_0 = arith.constant 0 : i32
    %2 = arith.cmpi ne, %1, %c0_i32_0 : i32
    scf.if %2 {
      %cst_14 = arith.constant 0.000000e+00 : f32
      %36 = vector.broadcast %cst_14 : f32 to vector<1x128xf32>
      %c0_15 = arith.constant 0 : index
      %c0_16 = arith.constant 0 : index
      %37 = vector.load %arg6[%c0_15, %c0_16] : memref<1x128xf32, #tpu.memory_space<vmem>>, vector<1x128xf32>
      tpu.vector_store %arg6[%c0_15, %c0_16], %36 {strides = array<i32>} : memref<1x128xf32, #tpu.memory_space<vmem>>, vector<1x128xf32>,
    } else {
    }
    %c0 = arith.constant 0 : index
    %c0_1 = arith.constant 0 : index
    %3 = vector.load %arg2[%c0, %c0_1] : memref<8x128xf32, #tpu.memory_space<vmem>>, vector<8x128xf32>
    %c0_2 = arith.constant 0 : index
    %c0_3 = arith.constant 0 : index
    %4 = vector.load %arg3[%c0_2, %c0_3] : memref<8x128xf32, #tpu.memory_space<vmem>>, vector<8x128xf32>
    %c0_4 = arith.constant 0 : index
    %c0_5 = arith.constant 0 : index
    %5 = vector.load %arg4[%c0_4, %c0_5] : memref<1x128xf32, #tpu.memory_space<vmem>>, vector<1x128xf32>
    %cst = arith.constant 0.000000e+00 : f32
    %6 = vector.broadcast %cst : f32 to vector<8x128xf32>
    %7 = arith.maximumf %4, %6 : vector<8x128xf32>
    %8 = vector.broadcast %5 : vector<1x128xf32> to vector<8x128xf32>
    %9 = arith.mulf %4, %8 : vector<8x128xf32>
    %10 = arith.subf %7, %9 : vector<8x128xf32>
    %11 = math.absf %4 : vector<8x128xf32>
    %cst_6 = arith.constant 0.000000e+00 : f32
    %12 = vector.broadcast %cst_6 : f32 to vector<8x128xf32>
    %13 = arith.subf %12, %11 : vector<8x128xf32>
    %14 = math.exp %13 : vector<8x128xf32>
    %15 = math.log1p %14 : vector<8x128xf32>
    %16 = arith.addf %10, %15 : vector<8x128xf32>
    %17 = arith.mulf %3, %16 : vector<8x128xf32>
    %cst_7 = arith.constant dense<0.000000e+00> : vector<128xf32>
    %18 = vector.multi_reduction <add>, %17, %cst_7 [0] : vector<8x128xf32> to vector<128xf32>
    %19 = vector.shape_cast %18 : vector<128xf32> to vector<1x128xf32>
    %c2_i32 = arith.constant 2 : i32
    %20 = arith.muli %arg0, %c2_i32 : i32
    %21 = arith.addi %20, %arg1 : i32
    %c128_i32 = arith.constant 128 : i32
    %22 = arith.muli %21, %c128_i32 : i32
    %23 = tpu.iota {dimensions = array<i32: 1>} : vector<1x128xi32>
    %24 = vector.broadcast %22 : i32 to vector<1x128xi32>
    %25 = arith.addi %24, %23 : vector<1x128xi32>
    %c512_i32 = arith.constant 512 : i32
    %26 = vector.broadcast %c512_i32 : i32 to vector<1x128xi32>
    %27 = arith.cmpi slt, %25, %26 : vector<1x128xi32>
    %c0_8 = arith.constant 0 : index
    %c0_9 = arith.constant 0 : index
    %28 = vector.load %arg6[%c0_8, %c0_9] : memref<1x128xf32, #tpu.memory_space<vmem>>, vector<1x128xf32>
    %cst_10 = arith.constant 0.000000e+00 : f32
    %29 = vector.broadcast %cst_10 : f32 to vector<1x128xf32>
    %30 = arith.select %27, %19, %29 : vector<1x128xi1>, vector<1x128xf32>
    %31 = arith.addf %28, %30 : vector<1x128xf32>
    %c0_11 = arith.constant 0 : index
    %c0_12 = arith.constant 0 : index
    %32 = vector.load %arg6[%c0_11, %c0_12] : memref<1x128xf32, #tpu.memory_space<vmem>>, vector<1x128xf32>
    tpu.vector_store %arg6[%c0_11, %c0_12], %31 {strides = array<i32>} : memref<1x128xf32, #tpu.memory_space<vmem>>, vector<1x128xf32>,
    %c1_i32 = arith.constant 1 : i32
    %33 = arith.cmpi eq, %arg1, %c1_i32 : i32
    %34 = arith.extui %33 : i1 to i32
    %c0_i32_13 = arith.constant 0 : i32
    %35 = arith.cmpi ne, %34, %c0_i32_13 : i32
    scf.if %35 {
      %c0_14 = arith.constant 0 : index
      %c0_15 = arith.constant 0 : index
      %36 = vector.load %arg6[%c0_14, %c0_15] : memref<1x128xf32, #tpu.memory_space<vmem>>, vector<1x128xf32>
      %37 = vector.shape_cast %36 : vector<1x128xf32> to vector<1x1x128xf32>
      %cst_16 = arith.constant dense<0.000000e+00> : vector<1xf32>
      %38 = vector.multi_reduction <add>, %37, %cst_16 [1, 2] : vector<1x1x128xf32> to vector<1xf32>
      %39 = vector.shape_cast %38 : vector<1xf32> to vector<1x1x1xf32>
      %40 = vector.extract %39[0, 0, 0] : f32 from vector<1x1x1xf32>
      %41 = vector.broadcast %40 : f32 to vector<1x128xf32>
      %c0_17 = arith.constant 0 : index
      %c0_18 = arith.constant 0 : index
      %42 = vector.load %arg5[%c0_17, %c0_18] : memref<1x128xf32, #tpu.memory_space<vmem>>, vector<1x128xf32>
      tpu.vector_store %arg5[%c0_17, %c0_18], %41 {strides = array<i32>} : memref<1x128xf32, #tpu.memory_space<vmem>>, vector<1x128xf32>,
    } else {
    }
    return
  }
  func.func @transform_0(%arg0: i32, %arg1: i32) -> (i32, i32) {
    %c2_i32 = arith.constant 2 : i32
    %0 = arith.muli %arg0, %c2_i32 : i32
    %1 = arith.addi %0, %arg1 : i32
    %c3_i32 = arith.constant 3 : i32
    %2 = arith.minsi %1, %c3_i32 : i32
    %c0_i32 = arith.constant 0 : i32
    %c0_i32_0 = arith.constant 0 : i32
    return %c0_i32, %2 : i32, i32
  }
  func.func @transform_1(%arg0: i32, %arg1: i32) -> (i32, i32) {
    %c2_i32 = arith.constant 2 : i32
    %0 = arith.muli %arg0, %c2_i32 : i32
    %1 = arith.addi %0, %arg1 : i32
    %c3_i32 = arith.constant 3 : i32
    %2 = arith.minsi %1, %c3_i32 : i32
    %c0_i32 = arith.constant 0 : i32
    %c0_i32_0 = arith.constant 0 : i32
    return %c0_i32, %2 : i32, i32
  }
  func.func @transform_2(%arg0: i32, %arg1: i32) -> (i32, i32) {
    %c2_i32 = arith.constant 2 : i32
    %0 = arith.muli %arg0, %c2_i32 : i32
    %1 = arith.addi %0, %arg1 : i32
    %c3_i32 = arith.constant 3 : i32
    %2 = arith.minsi %1, %c3_i32 : i32
    %c0_i32 = arith.constant 0 : i32
    %c0_i32_0 = arith.constant 0 : i32
    return %c0_i32, %2 : i32, i32
  }
  func.func @transform_3(%arg0: i32, %arg1: i32) -> (i32, i32) {
    %c0_i32 = arith.constant 0 : i32
    %c0_i32_0 = arith.constant 0 : i32
    return %c0_i32, %arg0 : i32, i32
  }
}

</mosaic_0001>

<llo_original>
// kernel: tpu_custom_call.1
$region0: #{tpu_custom_call.1}
  #allocation0 [shape = 'u32[]', space=smem, size = 0x4, offset = 0x4, fixed_abs, tag = 'smem constant byte address 0x4 - core index']
  #allocation1 [shape = 'u32[144,128]{1,0:T(1,128)}', space=vmem, size = 0x12000, scoped, tag = 'internal scratch']
  #allocation2 [shape = 'f32[1,128]{1,0:T(1,128)}', space=vmem, size = 0x200, scoped, tag = 'scratch operand']
  %s0 = inlined_call_operand.hbm [shape: f32[8,512], index: 0, kind: input, shape index: {}]
  %s1 = inlined_call_operand.hbm [shape: f32[8,512], index: 1, kind: input, shape index: {}]
  %s2 = inlined_call_operand.hbm [shape: f32[1,512], index: 2, kind: input, shape index: {}]
  %s3 = inlined_call_operand.hbm [shape: f32[1,256], index: 3, kind: output, shape index: {}]
  %s4 = sld [smem:[#allocation0]]
  $region65: #{tpu_custom_call.1} parent=0
    _
  %s6 = ssub.s32 1, %s4
  %s7 = scalar_select 0, %s6, %s4
  $region1: #{tpu_custom_call.1} parent=0
    #allocation3 [shape = 'u8[8192]{0}', space=vmem, size = 0x2000, scoped, tag = 'input window, operand 0']
    #allocation4 [shape = 's32[2]{0}', space=sflag, size = 0x8, scoped, tag = 'scoped memory for tpu_custom_call.1']
    #allocation5 [shape = 's32[2]{0}', space=sflag, size = 0x8, scoped, tag = 'scoped memory for tpu_custom_call.1']
    #allocation6 [shape = 'u8[8192]{0}', space=vmem, size = 0x2000, scoped, tag = 'input window, operand 1']
    #allocation7 [shape = 's32[2]{0}', space=sflag, size = 0x8, scoped, tag = 'scoped memory for tpu_custom_call.1']
    #allocation8 [shape = 'u8[1024]{0}', space=vmem, size = 0x400, scoped, tag = 'input window, operand 2']
    #allocation9 [shape = 'u8[1024]{0}', space=vmem, size = 0x400, scoped, tag = 'output window, operand 0']
    %8 = vsyncpa [#allocation4], 0
    %s9 = scalar_lea.sflag [#allocation4], 1
    %10 = vsyncpa %s9, 0
    %11 = vsyncpa [#allocation7], 0
    %s12 = scalar_lea.sflag [#allocation7], 1
    %13 = vsyncpa %s12, 0
    %14 = vsyncpa [#allocation5], 0
    %s15 = scalar_lea.sflag [#allocation5], 1
    %16 = vsyncpa %s15, 0
    loop: start=0, step=1, limit=6
    $region2: #{tpu_custom_call.1} parent=1 // loop_pre_header
      _
    $region3: #{tpu_custom_call.1} parent=1 // loop_header
      %s18 = sphi 0, %s22
      %p19 = scmp.ge.s32.totalorder %s18, 6
      %s25 = sphi 0, %s37
      %s26 = sphi 0, %s33
      %s27 = sphi 0, %s25
      %s28 = sphi 0, %s26
      %s29 = sphi 0, %s27
      %s30 = sphi 0, %s28
      %s48 = sphi 0, %s50
      %s51 = sphi 0, %s48
      %s52 = sphi 0, %s51
      %s68 = sphi 0, %s52
      %s82 = sphi 0, %s84
      %s85 = sphi 0, %s82
      %s86 = sphi 0, %s85
      %s102 = sphi 0, %s86
      %s116 = sphi 0, %s118
      %s119 = sphi 0, %s116
      %s120 = sphi 0, %s119
      %s136 = sphi 0, %s120
      %s142 = sphi 0, %s144
      %s145 = sphi 0, %s142
      %s146 = sphi 0, %s145
      %s162 = sphi 0, %s146
    $region4: #{tpu_custom_call.1} parent=1 // loop_header_branch
      %21 = sbr.rel (%p19) target = $region8
    $region5: #{tpu_custom_call.1} parent=1 // loop_body
      %s23 = ssub.s32 %s18, 1
      %s24 = ssub.s32 %s18, 2
      %s31 = sadd.s32 1, %s26
      %p32 = scmp.ge.s32.totalorder %s31, 2
      %s33 = scalar_select %p32, 0, %s31
      %s34 = sadd.s32 1, %s25
      %s35 = scalar_select %p32, %s34, %s25
      %p36 = scmp.ge.s32.totalorder %s35, 2
      %s37 = scalar_select %p36, 0, %s35
      %s38 = smul.u32 %s25, 2
      %s39 = sadd.s32 %s38, %s26
      %p40 = scmp.lt.s32.totalorder %s39, 3
      %s41 = scalar_select %p40, %s39, 3
      %s42 = smul.u32 %s37, 2
      %s43 = sadd.s32 %s42, %s33
      %p44 = scmp.lt.s32.totalorder %s43, 3
      %s45 = scalar_select %p44, %s43, 3
      %s46 = ssub.s32 %s41, %s45
      %p47 = scmp.eq.s32.totalorder %s46, 0
      %s49 = sadd.s32 %s48, 1
      %s50 = scalar_select %p47, %s48, %s49
      %p53 = pneg %p47
      %p54 = scmp.eq.s32.totalorder %s18, 3
      %p55 = por %p53, %p54
      %p56 = scmp.ne.s32.totalorder %s48, %s51
      %p57 = scmp.eq.s32.totalorder %s18, 0
      %p58 = por %p56, %p57
      %p59 = scmp.ne.s32.totalorder %s48, %s51
      %p60 = scmp.eq.s32.totalorder %s23, 3
      %p61 = por %p59, %p60
      %p62 = scmp.ne.s32.totalorder %s51, %s52
      %p63 = scmp.eq.s32.totalorder %s23, 0
      %p64 = por %p62, %p63
      %p65 = scmp.ne.s32.totalorder %s51, %s52
      %p66 = scmp.eq.s32.totalorder %s24, 3
      %p67 = por %p65, %p66
      %p69 = scmp.ne.s32.totalorder %s52, %s68
      %p70 = scmp.eq.s32.totalorder %s24, 0
      %p71 = por %p69, %p70
      %s72 = smul.u32 %s25, 2
      %s73 = sadd.s32 %s72, %s26
      %p74 = scmp.lt.s32.totalorder %s73, 3
      %s75 = scalar_select %p74, %s73, 3
      %s76 = smul.u32 %s37, 2
      %s77 = sadd.s32 %s76, %s33
      %p78 = scmp.lt.s32.totalorder %s77, 3
      %s79 = scalar_select %p78, %s77, 3
      %s80 = ssub.s32 %s75, %s79
      %p81 = scmp.eq.s32.totalorder %s80, 0
      %s83 = sadd.s32 %s82, 1
      %s84 = scalar_select %p81, %s82, %s83
      %p87 = pneg %p81
      %p88 = scmp.eq.s32.totalorder %s18, 3
      %p89 = por %p87, %p88
      %p90 = scmp.ne.s32.totalorder %s82, %s85
      %p91 = scmp.eq.s32.totalorder %s18, 0
      %p92 = por %p90, %p91
      %p93 = scmp.ne.s32.totalorder %s82, %s85
      %p94 = scmp.eq.s32.totalorder %s23, 3
      %p95 = por %p93, %p94
      %p96 = scmp.ne.s32.totalorder %s85, %s86
      %p97 = scmp.eq.s32.totalorder %s23, 0
      %p98 = por %p96, %p97
      %p99 = scmp.ne.s32.totalorder %s85, %s86
      %p100 = scmp.eq.s32.totalorder %s24, 3
      %p101 = por %p99, %p100
      %p103 = scmp.ne.s32.totalorder %s86, %s102
      %p104 = scmp.eq.s32.totalorder %s24, 0
      %p105 = por %p103, %p104
      %s106 = smul.u32 %s25, 2
      %s107 = sadd.s32 %s106, %s26
      %p108 = scmp.lt.s32.totalorder %s107, 3
      %s109 = scalar_select %p108, %s107, 3
      %s110 = smul.u32 %s37, 2
      %s111 = sadd.s32 %s110, %s33
      %p112 = scmp.lt.s32.totalorder %s111, 3
      %s113 = scalar_select %p112, %s111, 3
      %s114 = ssub.s32 %s109, %s113
      %p115 = scmp.eq.s32.totalorder %s114, 0
      %s117 = sadd.s32 %s116, 1
      %s118 = scalar_select %p115, %s116, %s117
      %p121 = pneg %p115
      %p122 = scmp.eq.s32.totalorder %s18, 3
      %p123 = por %p121, %p122
      %p124 = scmp.ne.s32.totalorder %s116, %s119
      %p125 = scmp.eq.s32.totalorder %s18, 0
      %p126 = por %p124, %p125
      %p127 = scmp.ne.s32.totalorder %s116, %s119
      %p128 = scmp.eq.s32.totalorder %s23, 3
      %p129 = por %p127, %p128
      %p130 = scmp.ne.s32.totalorder %s119, %s120
      %p131 = scmp.eq.s32.totalorder %s23, 0
      %p132 = por %p130, %p131
      %p133 = scmp.ne.s32.totalorder %s119, %s120
      %p134 = scmp.eq.s32.totalorder %s24, 3
      %p135 = por %p133, %p134
      %p137 = scmp.ne.s32.totalorder %s120, %s136
      %p138 = scmp.eq.s32.totalorder %s24, 0
      %p139 = por %p137, %p138
      %s140 = ssub.s32 %s25, %s37
      %p141 = scmp.eq.s32.totalorder %s140, 0
      %s143 = sadd.s32 %s142, 1
      %s144 = scalar_select %p141, %s142, %s143
      %p147 = pneg %p141
      %p148 = scmp.eq.s32.totalorder %s18, 3
      %p149 = por %p147, %p148
      %p150 = scmp.ne.s32.totalorder %s142, %s145
      %p151 = scmp.eq.s32.totalorder %s18, 0
      %p152 = por %p150, %p151
      %p153 = scmp.ne.s32.totalorder %s142, %s145
      %p154 = scmp.eq.s32.totalorder %s23, 3
      %p155 = por %p153, %p154
      %p156 = scmp.ne.s32.totalorder %s145, %s146
      %p157 = scmp.eq.s32.totalorder %s23, 0
      %p158 = por %p156, %p157
      %p159 = scmp.ne.s32.totalorder %s145, %s146
      %p160 = scmp.eq.s32.totalorder %s24, 3
      %p161 = por %p159, %p160
      %p163 = scmp.ne.s32.totalorder %s146, %s162
      %p164 = scmp.eq.s32.totalorder %s24, 0
      %p165 = por %p163, %p164
      %p166 = scmp.le.s32.totalorder 1, %s18
      %p167 = scmp.lt.s32.totalorder %s18, 5
      %p168 = pnand %p166, %p167
      %p169 = pneg %p168
      // Predicated region
      $region9: #{tpu_custom_call.1} parent=5 // pred_check
        _
      $region10: #{tpu_custom_call.1} parent=5 // pred_check_branch
        %171 = sbr.rel (%p168) target = $region12
      $region11: #{tpu_custom_call.1} parent=5 // pred_region
        %s172 = ssub.s32 %s18, 1
      $region12: #{tpu_custom_call.1} parent=5 // pred_fallthru
        _
      %p173 = scmp.lt.s32.totalorder %s18, 4
      // Predicated region
      $region13: #{tpu_custom_call.1} parent=5 // pred_check
        %p174 = pneg %p173
      $region14: #{tpu_custom_call.1} parent=5 // pred_check_branch
        %176 = sbr.rel (%p174) target = $region16
      $region15: #{tpu_custom_call.1} parent=5 // pred_region
        // Predicated region
        $region17: #{tpu_custom_call.1} parent=15 // pred_check
          %p177 = pneg %p58
        $region18: #{tpu_custom_call.1} parent=15 // pred_check_branch
          %179 = sbr.rel (%p177) target = $region20
        $region19: #{tpu_custom_call.1} parent=15 // pred_region
          %s180 = sand.u32 %s48, 1
          %s181 = scalar_lea.sflag [#allocation4], %s180
          %s182 = sand.u32 %s48, 1
          %s183 = smul.addr %s182, 8
          %s184 = scalar_lea.vmem [#allocation3], %s183
          %s185 = smul.u32 %s25, 2
          %s186 = sadd.s32 %s185, %s26
          %p187 = scmp.lt.s32.totalorder %s186, 3
          %s188 = scalar_select %p187, %s186, 3
          %s190 = ssub.s32 128, 128
          %191 = vsyncadd %s181, %s190
          %s192 = smul.addr %s188, 128
          %s193 = scalar_lea.hbm %s0, %s192
          %s195 = sshll.u32 %s184, 4
          %s196 = int_to_ptr.vmem [resolvable:$true] %s195
          %198 = dma.hbm_to_vmem [thread:$0]  %s193, 128, %s196, %s181
        $region20: #{tpu_custom_call.1} parent=15 // pred_fallthru
          _
        // Predicated region
        $region21: #{tpu_custom_call.1} parent=15 // pred_check
          %p199 = pneg %p92
        $region22: #{tpu_custom_call.1} parent=15 // pred_check_branch
          %201 = sbr.rel (%p199) target = $region24
        $region23: #{tpu_custom_call.1} parent=15 // pred_region
          %s202 = sand.u32 %s18, 1
          %s203 = scalar_lea.sflag [#allocation7], %s202
          %s204 = sand.u32 %s82, 1
          %s205 = smul.addr %s204, 8
          %s206 = scalar_lea.vmem [#allocation6], %s205
          %s207 = smul.u32 %s25, 2
          %s208 = sadd.s32 %s207, %s26
          %p209 = scmp.lt.s32.totalorder %s208, 3
          %s210 = scalar_select %p209, %s208, 3
          %s212 = ssub.s32 128, 128
          %213 = vsyncadd %s203, %s212
          %s214 = smul.addr %s210, 128
          %s215 = scalar_lea.hbm %s1, %s214
          %s217 = sshll.u32 %s206, 4
          %s218 = int_to_ptr.vmem [resolvable:$true] %s217
          %220 = dma.hbm_to_vmem [thread:$0]  %s215, 128, %s218, %s203
        $region24: #{tpu_custom_call.1} parent=15 // pred_fallthru
          _
        // Predicated region
        $region25: #{tpu_custom_call.1} parent=15 // pred_check
          %p221 = pneg %p126
        $region26: #{tpu_custom_call.1} parent=15 // pred_check_branch
          %223 = sbr.rel (%p221) target = $region28
        $region27: #{tpu_custom_call.1} parent=15 // pred_region
          %s224 = sand.u32 %s18, 1
          %s225 = scalar_lea.sflag [#allocation7], %s224
          %s226 = sand.u32 %s116, 1
          %s227 = scalar_lea.vmem [#allocation8], %s226
          %s228 = smul.u32 %s25, 2
          %s229 = sadd.s32 %s228, %s26
          %p230 = scmp.lt.s32.totalorder %s229, 3
          %s231 = scalar_select %p230, %s229, 3
          %s233 = ssub.s32 16, 16
          %234 = vsyncadd %s225, %s233
          %s235 = smul.addr %s231, 16
          %s236 = scalar_lea.hbm %s2, %s235
          %s238 = sshll.u32 %s227, 4
          %s239 = int_to_ptr.vmem [resolvable:$true] %s238
          %241 = dma.hbm_to_vmem [thread:$0]  %s236, 16, %s239, %s225
        $region28: #{tpu_custom_call.1} parent=15 // pred_fallthru
          _
      $region16: #{tpu_custom_call.1} parent=5 // pred_fallthru
        _
      %p242 = scmp.le.s32.totalorder 1, %s18
      %p243 = scmp.lt.s32.totalorder %s18, 5
      %p244 = pnand %p242, %p243
      %p245 = pneg %p244
      // Predicated region
      $region29: #{tpu_custom_call.1} parent=5 // pred_check
        _
      $region30: #{tpu_custom_call.1} parent=5 // pred_check_branch
        %247 = sbr.rel (%p244) target = $region32
      $region31: #{tpu_custom_call.1} parent=5 // pred_region
        %s248 = ssub.s32 %s18, 1
        %s249 = sand.u32 %s51, 1
        %s250 = scalar_lea.sflag [#allocation4], %s249
        %s251 = sand.u32 %s51, 1
        %s252 = smul.addr %s251, 8
        %s253 = scalar_lea.vmem [#allocation3], %s252
        // Predicated region
        $region33: #{tpu_custom_call.1} parent=31 // pred_check
          %p254 = pneg %p64
        $region34: #{tpu_custom_call.1} parent=31 // pred_check_branch
          %256 = sbr.rel (%p254) target = $region36
        $region35: #{tpu_custom_call.1} parent=31 // pred_region
          %257 = dma.done %s250, 128
        $region36: #{tpu_custom_call.1} parent=31 // pred_fallthru
          _
        %s258 = sand.u32 %s23, 1
        %s259 = scalar_lea.sflag [#allocation7], %s258
        %s260 = sand.u32 %s85, 1
        %s261 = smul.addr %s260, 8
        %s262 = scalar_lea.vmem [#allocation6], %s261
        // Predicated region
        $region37: #{tpu_custom_call.1} parent=31 // pred_check
          %p263 = pneg %p98
        $region38: #{tpu_custom_call.1} parent=31 // pred_check_branch
          %265 = sbr.rel (%p263) target = $region40
        $region39: #{tpu_custom_call.1} parent=31 // pred_region
          %266 = dma.done %s259, 128
        $region40: #{tpu_custom_call.1} parent=31 // pred_fallthru
          _
        %s267 = sand.u32 %s23, 1
        %s268 = scalar_lea.sflag [#allocation7], %s267
        %s269 = sand.u32 %s119, 1
        %s270 = scalar_lea.vmem [#allocation8], %s269
        // Predicated region
        $region41: #{tpu_custom_call.1} parent=31 // pred_check
          %p271 = pneg %p132
        $region42: #{tpu_custom_call.1} parent=31 // pred_check_branch
          %273 = sbr.rel (%p271) target = $region44
        $region43: #{tpu_custom_call.1} parent=31 // pred_region
          %274 = dma.done %s268, 16
        $region44: #{tpu_custom_call.1} parent=31 // pred_fallthru
          _
        %s275 = sand.u32 %s51, 1
        %s276 = scalar_lea.sflag [#allocation4], %s275
        %s277 = sand.u32 %s51, 1
        %s278 = smul.addr %s277, 8
        %s279 = scalar_lea.vmem [#allocation3], %s278
        %p280 = pneg %p64
        %p281 = pneg %p61
        %s282 = sand.u32 %s23, 1
        %s283 = scalar_lea.sflag [#allocation7], %s282
        %s284 = sand.u32 %s85, 1
        %s285 = smul.addr %s284, 8
        %s286 = scalar_lea.vmem [#allocation6], %s285
        %p287 = pneg %p98
        %p288 = pneg %p95
        %s289 = sand.u32 %s23, 1
        %s290 = scalar_lea.sflag [#allocation7], %s289
        %s291 = sand.u32 %s119, 1
        %s292 = scalar_lea.vmem [#allocation8], %s291
        %p293 = pneg %p132
        %p294 = pneg %p129
        %p295 = pneg %p158
        %p296 = pneg %p155
        %s297 = sand.u32 %s145, 1
        %s298 = scalar_lea.sflag [#allocation5], %s297
        %s299 = sand.u32 %s145, 1
        %s300 = scalar_lea.vmem [#allocation9], %s299
        %s301 = smul.u32 %s27, 2
        %s302 = sadd.s32 %s301, %s28
        %p303 = scmp.lt.s32.totalorder %s302, 3
        %s304 = scalar_select %p303, %s302, 3
        %s305 = smul.u32 %s27, 2
        %s306 = sadd.s32 %s305, %s28
        %p307 = scmp.lt.s32.totalorder %s306, 3
        %s308 = scalar_select %p307, %s306, 3
        %s309 = smul.u32 %s27, 2
        %s310 = sadd.s32 %s309, %s28
        %p311 = scmp.lt.s32.totalorder %s310, 3
        %s312 = scalar_select %p311, %s310, 3
        %p313 = scmp.eq.s32.totalorder %s28, 0
        // Predicated region
        $region45: #{tpu_custom_call.1} parent=31 // pred_check
          %p314 = pneg %p313
        $region46: #{tpu_custom_call.1} parent=31 // pred_check_branch
          %316 = sbr.rel (%p314) target = $region48
        $region47: #{tpu_custom_call.1} parent=31 // pred_region
          %317 = vst [vmem:[#allocation2] sm:$0x1] 0.0
        $region48: #{tpu_custom_call.1} parent=31 // pred_fallthru
          _
        %v318 = vld [vmem:[%s253] sm:$0xff]
        %v319 = vld [vmem:[%s262] sm:$0xff]
        %v320 = vld [vmem:[%s270] sm:$0x1]
        %v321 = vmax.f32 %v319, 0.0
        %v323 = vlaneseq
        %v324 = vshrl.u32 %v323, 7
        %v325 = vsub.s32 0, %v324
        %v326 = vrot.slane %v320, %v325
        %v328 = vmul.f32 %v319, %v326
        %v329 = vsub.f32 %v321, %v328
        %v330 = vand.u32 2147483647, %v319
        %v331 = vsub.f32 0.0, %v330
        %v332 = vmul.f32 %v331, 1.442695
        %v333 = vpow.pop %v332
        %v334 = vadd.f32 %v333, 1.0
        %v335 = vlog2.pop %v334
        %v336 = vmul.f32 %v335, 0.6931472
        %v337 = vmul.f32 -0.5, %v333
        %v338 = vadd.f32 %v337, 1.0
        %v339 = vmul.f32 %v338, %v333
        %v340 = vand.u32 2147483647, %v333
        %vm341 = vcmp.lt.f32.partialorder %v340, 0.0004427343
        %v342 = vsel %vm341, %v339, %v336
        %v343 = vadd.f32 %v329, %v342
        %v344 = vmul.f32 %v318, %v343
        %v345 = vrot.slane %v344, 4
        %v346 = vadd.f32 %v344, %v345
        %v347 = vrot.slane %v346, 2
        %v348 = vadd.f32 %v346, %v347
        %v349 = vrot.slane %v348, 1
        %v350 = vadd.f32 %v348, %v349
        %s351 = smul.u32 %s27, 2
        %s352 = sadd.s32 %s351, %s28
        %s353 = smul.u32 %s352, 128
        %v354 = vlaneseq
        %v355 = vand.u32 %v354, 127
        %v356 = vstv %s353
        %v357 = vadd.s32 %v356, %v355
        %vm358 = vcmp.lt.s32.totalorder %v357, 512
        %v359 = vld [vmem:[#allocation2] sm:$0x1]
        %v360 = vsel %vm358, %v350, 0.0
        %v361 = vadd.f32 %v359, %v360
        %362 = vst [vmem:[#allocation2] sm:$0x1] %v361
        %p363 = scmp.eq.s32.totalorder %s28, 1
        // Predicated region
        $region49: #{tpu_custom_call.1} parent=31 // pred_check
          %p364 = pneg %p363
        $region50: #{tpu_custom_call.1} parent=31 // pred_check_branch
          %366 = sbr.rel (%p364) target = $region52
        $region51: #{tpu_custom_call.1} parent=31 // pred_region
          %v367 = vld [vmem:[#allocation2] sm:$0x1]
          %vm368 = vcmask 1040384
          %v369 = vsel %vm368, %v367, 0.0
          %370 = vadd.xlane.f32.xlu0 %v369
          %v371 = vpop.xlane.xlu0 %370
          %v372 = vrot.slane %v371, 4
          %v373 = vadd.f32 %v371, %v372
          %v374 = vrot.slane %v373, 2
          %v375 = vadd.f32 %v373, %v374
          %v376 = vrot.slane %v375, 1
          %v377 = vadd.f32 %v375, %v376
          %s378 = vtos %v377
          %v379 = vstv %s378
          %380 = vst [vmem:[%s300] sm:$0x1] %v379
        $region52: #{tpu_custom_call.1} parent=31 // pred_fallthru
          _
        %s381 = sand.u32 %s145, 1
        %s382 = scalar_lea.sflag [#allocation5], %s381
        %s383 = sand.u32 %s145, 1
        %s384 = scalar_lea.vmem [#allocation9], %s383
        // Predicated region
        $region53: #{tpu_custom_call.1} parent=31 // pred_check
          %p385 = pneg %p155
        $region54: #{tpu_custom_call.1} parent=31 // pred_check_branch
          %387 = sbr.rel (%p385) target = $region56
        $region55: #{tpu_custom_call.1} parent=31 // pred_region
          %s389 = ssub.s32 16, 16
          %390 = vsyncadd %s382, %s389
          %s391 = smul.addr %s27, 16
          %s392 = scalar_lea.hbm %s3, %s391
          %s394 = sshll.u32 %s384, 4
          %s395 = int_to_ptr.vmem [resolvable:$true] %s394
          %397 = dma.vmem_to_hbm [thread:$0]  %s395, 16, %s392, %s382
        $region56: #{tpu_custom_call.1} parent=31 // pred_fallthru
          _
      $region32: #{tpu_custom_call.1} parent=5 // pred_fallthru
        _
      %p398 = scmp.le.s32.totalorder 2, %s18
      // Predicated region
      $region57: #{tpu_custom_call.1} parent=5 // pred_check
        %p399 = pneg %p398
      $region58: #{tpu_custom_call.1} parent=5 // pred_check_branch
        %401 = sbr.rel (%p399) target = $region60
      $region59: #{tpu_custom_call.1} parent=5 // pred_region
        %s402 = ssub.s32 %s18, 2
        // Predicated region
        $region61: #{tpu_custom_call.1} parent=59 // pred_check
          %p403 = pneg %p161
        $region62: #{tpu_custom_call.1} parent=59 // pred_check_branch
          %405 = sbr.rel (%p403) target = $region64
        $region63: #{tpu_custom_call.1} parent=59 // pred_region
          %s406 = sand.u32 %s146, 1
          %s407 = scalar_lea.sflag [#allocation5], %s406
          %s408 = sand.u32 %s146, 1
          %s409 = scalar_lea.vmem [#allocation9], %s408
          %410 = dma.done %s407, 16
        $region64: #{tpu_custom_call.1} parent=59 // pred_fallthru
          _
      $region60: #{tpu_custom_call.1} parent=5 // pred_fallthru
        _
    $region6: #{tpu_custom_call.1} parent=1 // loop_footer
      %s22 = sadd.s32 1, %s18
    $region7: #{tpu_custom_call.1} parent=1 // loop_footer_branch
      %17 = sbr.rel target = $region3
    $region8: #{tpu_custom_call.1} parent=1 // loop_exit
      _
    %411 = vsyncpa [#allocation4], 1
    %s412 = scalar_lea.sflag [#allocation4], 1
    %413 = vsyncpa %s412, 1
    %414 = vsyncpa [#allocation7], 1
    %s415 = scalar_lea.sflag [#allocation7], 1
    %416 = vsyncpa %s415, 1
    %417 = vsyncpa [#allocation5], 1
    %s418 = scalar_lea.sflag [#allocation5], 1
    %419 = vsyncpa %s418, 1

</llo_original>
